<compile_context>
chip_gen: v7x
topology: tpu7x:2x2x1
jax: 0.10.0
libtpu: 0.0.40
codegen_flags: <defaults>
</compile_context>

<pallas_src>
import jax
import jax.numpy as jnp
from jax.experimental import pallas as pl
from jax.experimental.pallas import tpu as pltpu


def ca_kernel(x_ref, w1_ref, b1_ref, w2_ref, b2_ref, o_ref):
    x = x_ref[...]                                  # (Bt, C, HW)
    xf = x.astype(jnp.float32)                      # pool / MLP in fp32

    # --- AdaptiveAvgPool2d(1): mean over the lane (HW) axis; C stays on the
    # sublane axis so nothing downstream needs a relayout.  -> (Bt, C, 1)
    pooled = jnp.mean(xf, axis=2, keepdims=True)

    # --- Conv2d(C, Cr, 1) + ReLU as broadcast-multiply + sublane reduce.
    # w1: (C, Cr).  (Bt,C,1)*(1,C,Cr) -> (Bt,C,Cr) -> sum over C -> (Bt,1,Cr)
    h = jnp.sum(pooled * w1_ref[...][None], axis=1, keepdims=True)
    h = jnp.maximum(h + b1_ref[...][None], 0.0)     # (Bt, 1, Cr)

    # --- Conv2d(Cr, C, 1) + Sigmoid as broadcast-multiply + lane reduce.
    # w2: (C, Cr).  (Bt,1,Cr)*(1,C,Cr) -> (Bt,C,Cr) -> sum over Cr -> (Bt,C,1)
    s = jnp.sum(h * w2_ref[...][None], axis=2, keepdims=True)
    s = jax.nn.sigmoid(s + b2_ref[...][None])       # (Bt, C, 1)

    # --- Channel-wise rescale: s already has C on sublanes, so this is a pure
    # lane-broadcast VPU multiply; output stores stay lane-dense over HW.
    o_ref[...] = (xf * s).astype(o_ref.dtype)


def _pick_batch_block(B, plane_bytes, target_bytes=2 * 1024 * 1024):
    """Largest divisor of B whose (Bt, C, HW) x tile stays near target_bytes."""
    bt = max(1, min(B, target_bytes // max(plane_bytes, 1)))
    while B % bt:
        bt -= 1
    # v7x has 2 TensorCores: prefer >=2 parallel grid steps as long as the
    # per-step tile stays comfortably large.
    if B // bt < 2 and B > 1 and (bt // 2) * plane_bytes >= 256 * 1024:
        bt //= 2
        while B % bt:
            bt -= 1
    return bt


def ca_layer(x_nchw, w1, b1, w2, b2):
    """Channel-attention forward.

    x_nchw : (B, C, H, W)
    w1     : (C, Cr)   == PyTorch conv1.weight[:, :, 0, 0].T
    b1     : (1, Cr)   == PyTorch conv1.bias[None, :]
    w2     : (C, Cr)   == PyTorch conv2.weight[:, :, 0, 0]
    b2     : (C, 1)    == PyTorch conv2.bias[:, None]
    returns (B, C, H, W)
    """
    B, C, H, W = x_nchw.shape
    Cr = w1.shape[1]
    HW = H * W
    x = x_nchw.reshape(B, C, HW)

    plane_bytes = C * HW * x.dtype.itemsize
    bt = _pick_batch_block(B, plane_bytes)
    # TODO(synk): if a single (1, C, HW) plane ever exceeds the VMEM budget
    # (notably v7x's 64 MiB), switch to a two-pass HW-tiled structure
    # (pass 1 accumulates channel sums over HW tiles, pass 2 rescales).

    out = pl.pallas_call(
        ca_kernel,
        out_shape=jax.ShapeDtypeStruct((B, C, HW), x.dtype),
        grid_spec=pltpu.PrefetchScalarGridSpec(
            num_scalar_prefetch=0,
            grid=(B // bt,),
            in_specs=[
                pl.BlockSpec((bt, C, HW), lambda b: (b, 0, 0)),  # x tile
                pl.BlockSpec((C, Cr), lambda b: (0, 0)),         # W1 (resident)
                pl.BlockSpec((1, Cr), lambda b: (0, 0)),         # b1
                pl.BlockSpec((C, Cr), lambda b: (0, 0)),         # W2 (resident)
                pl.BlockSpec((C, 1), lambda b: (0, 0)),          # b2
            ],
            out_specs=pl.BlockSpec((bt, C, HW), lambda b: (b, 0, 0)),
        ),
        compiler_params=pltpu.CompilerParams(
            dimension_semantics=("parallel",)),
    )(x, w1, b1, w2, b2)

    return out.reshape(B, C, H, W)


def ca_layer_ref(x, w1, b1, w2, b2):
    """Pure-JAX reference for correctness checking."""
    pooled = jnp.mean(x, axis=(2, 3))                   # (B, C)
    h = jnp.maximum(pooled @ w1 + b1, 0.0)              # (B, Cr)
    s = jax.nn.sigmoid(h @ w2.T + b2.T)                 # (B, C)
    return x * s[:, :, None, None]


if __name__ == "__main__":
    # Shapes consistent with CALayer(channel=32, reduction=16) -> Cr = 2.
    B, C, H, W = 2, 32, 16, 16
    reduction = 16
    Cr = C // reduction

    key = jax.random.PRNGKey(0)
    kx, k1, kb1, k2, kb2 = jax.random.split(key, 5)

    x = jax.random.normal(kx, (B, C, H, W), dtype=jnp.float32)

    # PyTorch conv weights (out, in, 1, 1) are carried as small matrices:
    # w1 = conv1.weight.squeeze().T (C, Cr), w2 = conv2.weight.squeeze() (C, Cr).
    w1 = jax.random.normal(k1, (C, Cr), dtype=jnp.float32) * 0.1
    b1 = jax.random.normal(kb1, (1, Cr), dtype=jnp.float32) * 0.1
    w2 = jax.random.normal(k2, (C, Cr), dtype=jnp.float32) * 0.1
    b2 = jax.random.normal(kb2, (C, 1), dtype=jnp.float32) * 0.1

    out = jax.block_until_ready(ca_layer(x, w1, b1, w2, b2))

    ref = ca_layer_ref(x, w1, b1, w2, b2)
    assert out.shape == (B, C, H, W)
    assert jnp.allclose(out, ref, atol=1e-5, rtol=1e-5), "mismatch vs reference"

    print("KERNEL_OK")
</pallas_src>

<mosaic_0001>
module attributes {stable_mosaic.version = 11 : i64} {
  func.func @ca_kernel(%arg0: i32, %arg1: memref<2x32x256xf32, #tpu.memory_space<vmem>>, %arg2: memref<32x2xf32, #tpu.memory_space<vmem>>, %arg3: memref<1x2xf32, #tpu.memory_space<vmem>>, %arg4: memref<32x2xf32, #tpu.memory_space<vmem>>, %arg5: memref<32x1xf32, #tpu.memory_space<vmem>>, %arg6: memref<2x32x256xf32, #tpu.memory_space<vmem>>) attributes {dimension_semantics = [#tpu.dimension_semantics<parallel>], iteration_bounds = array<i64: 1>, scalar_prefetch = 0 : i64, scratch_operands = 0 : i64, tpu.core_type = #tpu.core_type<tc>, window_params = [{transform_indices = @transform_0, window_bounds = array<i64: 2, 32, 256>}, {pipeline_mode = #tpu.pipeline_mode<synchronous>, transform_indices = @transform_1, window_bounds = array<i64: 32, 2>}, {pipeline_mode = #tpu.pipeline_mode<synchronous>, transform_indices = @transform_2, window_bounds = array<i64: 1, 2>}, {pipeline_mode = #tpu.pipeline_mode<synchronous>, transform_indices = @transform_3, window_bounds = array<i64: 32, 2>}, {pipeline_mode = #tpu.pipeline_mode<synchronous>, transform_indices = @transform_4, window_bounds = array<i64: 32, 1>}, {transform_indices = @transform_5, window_bounds = array<i64: 2, 32, 256>}]} {
    %c0 = arith.constant 0 : index
    %c0_0 = arith.constant 0 : index
    %c0_1 = arith.constant 0 : index
    %0 = vector.load %arg1[%c0, %c0_0, %c0_1] : memref<2x32x256xf32, #tpu.memory_space<vmem>>, vector<2x32x256xf32>
    %cst = arith.constant dense<0.000000e+00> : vector<2x32xf32>
    %1 = vector.multi_reduction <add>, %0, %cst [2] : vector<2x32x256xf32> to vector<2x32xf32>
    %2 = vector.shape_cast %1 : vector<2x32xf32> to vector<2x32x1xf32>
    %cst_2 = arith.constant 2.560000e+02 : f32
    %3 = vector.broadcast %cst_2 : f32 to vector<2x32x1xf32>
    %4 = arith.divf %2, %3 : vector<2x32x1xf32>
    %c0_3 = arith.constant 0 : index
    %c0_4 = arith.constant 0 : index
    %5 = vector.load %arg2[%c0_3, %c0_4] : memref<32x2xf32, #tpu.memory_space<vmem>>, vector<32x2xf32>
    %6 = vector.shape_cast %5 : vector<32x2xf32> to vector<1x32x2xf32>
    %7 = vector.broadcast %4 : vector<2x32x1xf32> to vector<2x32x2xf32>
    %8 = vector.broadcast %6 : vector<1x32x2xf32> to vector<2x32x2xf32>
    %9 = arith.mulf %7, %8 : vector<2x32x2xf32>
    %cst_5 = arith.constant dense<0.000000e+00> : vector<2x2xf32>
    %10 = vector.multi_reduction <add>, %9, %cst_5 [1] : vector<2x32x2xf32> to vector<2x2xf32>
    %11 = vector.shape_cast %10 : vector<2x2xf32> to vector<2x1x2xf32>
    %c0_6 = arith.constant 0 : index
    %c0_7 = arith.constant 0 : index
    %12 = vector.load %arg3[%c0_6, %c0_7] : memref<1x2xf32, #tpu.memory_space<vmem>>, vector<1x2xf32>
    %13 = vector.shape_cast %12 : vector<1x2xf32> to vector<1x1x2xf32>
    %14 = vector.broadcast %13 : vector<1x1x2xf32> to vector<2x1x2xf32>
    %15 = arith.addf %11, %14 : vector<2x1x2xf32>
    %cst_8 = arith.constant 0.000000e+00 : f32
    %16 = vector.broadcast %cst_8 : f32 to vector<2x1x2xf32>
    %17 = arith.maximumf %15, %16 : vector<2x1x2xf32>
    %c0_9 = arith.constant 0 : index
    %c0_10 = arith.constant 0 : index
    %18 = vector.load %arg4[%c0_9, %c0_10] : memref<32x2xf32, #tpu.memory_space<vmem>>, vector<32x2xf32>
    %19 = vector.shape_cast %18 : vector<32x2xf32> to vector<1x32x2xf32>
    %20 = vector.broadcast %17 : vector<2x1x2xf32> to vector<2x32x2xf32>
    %21 = vector.broadcast %19 : vector<1x32x2xf32> to vector<2x32x2xf32>
    %22 = arith.mulf %20, %21 : vector<2x32x2xf32>
    %cst_11 = arith.constant dense<0.000000e+00> : vector<2x32xf32>
    %23 = vector.multi_reduction <add>, %22, %cst_11 [2] : vector<2x32x2xf32> to vector<2x32xf32>
    %24 = vector.shape_cast %23 : vector<2x32xf32> to vector<2x32x1xf32>
    %c0_12 = arith.constant 0 : index
    %c0_13 = arith.constant 0 : index
    %25 = vector.load %arg5[%c0_12, %c0_13] : memref<32x1xf32, #tpu.memory_space<vmem>>, vector<32x1xf32>
    %26 = vector.shape_cast %25 : vector<32x1xf32> to vector<1x32x1xf32>
    %27 = vector.broadcast %26 : vector<1x32x1xf32> to vector<2x32x1xf32>
    %28 = arith.addf %24, %27 : vector<2x32x1xf32>
    %29 = arith.negf %28 : vector<2x32x1xf32>
    %30 = math.exp %29 : vector<2x32x1xf32>
    %cst_14 = arith.constant 1.000000e+00 : f32
    %31 = vector.broadcast %cst_14 : f32 to vector<2x32x1xf32>
    %32 = arith.addf %31, %30 : vector<2x32x1xf32>
    %33 = arith.divf %31, %32 : vector<2x32x1xf32>
    %34 = vector.broadcast %33 : vector<2x32x1xf32> to vector<2x32x256xf32>
    %35 = arith.mulf %0, %34 : vector<2x32x256xf32>
    %c0_15 = arith.constant 0 : index
    %c0_16 = arith.constant 0 : index
    %c0_17 = arith.constant 0 : index
    %36 = vector.load %arg6[%c0_15, %c0_16, %c0_17] : memref<2x32x256xf32, #tpu.memory_space<vmem>>, vector<2x32x256xf32>
    tpu.vector_store %arg6[%c0_15, %c0_16, %c0_17], %35 {strides = array<i32>} : memref<2x32x256xf32, #tpu.memory_space<vmem>>, vector<2x32x256xf32>,
    return
  }
  func.func @transform_0(%arg0: i32) -> (i32, i32, i32) {
    %c0_i32 = arith.constant 0 : i32
    %c0_i32_0 = arith.constant 0 : i32
    %c0_i32_1 = arith.constant 0 : i32
    return %arg0, %c0_i32, %c0_i32_0 : i32, i32, i32
  }
  func.func @transform_1(%arg0: i32) -> (i32, i32) {
    %c0_i32 = arith.constant 0 : i32
    %c0_i32_0 = arith.constant 0 : i32
    %c0_i32_1 = arith.constant 0 : i32
    return %c0_i32, %c0_i32_0 : i32, i32
  }
  func.func @transform_2(%arg0: i32) -> (i32, i32) {
    %c0_i32 = arith.constant 0 : i32
    %c0_i32_0 = arith.constant 0 : i32
    %c0_i32_1 = arith.constant 0 : i32
    return %c0_i32, %c0_i32_0 : i32, i32
  }
  func.func @transform_3(%arg0: i32) -> (i32, i32) {
    %c0_i32 = arith.constant 0 : i32
    %c0_i32_0 = arith.constant 0 : i32
    %c0_i32_1 = arith.constant 0 : i32
    return %c0_i32, %c0_i32_0 : i32, i32
  }
  func.func @transform_4(%arg0: i32) -> (i32, i32) {
    %c0_i32 = arith.constant 0 : i32
    %c0_i32_0 = arith.constant 0 : i32
    %c0_i32_1 = arith.constant 0 : i32
    return %c0_i32, %c0_i32_0 : i32, i32
  }
  func.func @transform_5(%arg0: i32) -> (i32, i32, i32) {
    %c0_i32 = arith.constant 0 : i32
    %c0_i32_0 = arith.constant 0 : i32
    %c0_i32_1 = arith.constant 0 : i32
    return %arg0, %c0_i32, %c0_i32_0 : i32, i32, i32
  }
}

</mosaic_0001>

<llo_original>
// kernel: tpu_custom_call.1
$region0: #{tpu_custom_call.1}
  #allocation0 [shape = 'u32[]', space=smem, size = 0x4, offset = 0x4, fixed_abs, tag = 'smem constant byte address 0x4 - core index']
  #allocation1 [shape = 'u32[144,128]{1,0:T(1,128)}', space=vmem, size = 0x12000, scoped, tag = 'internal scratch']
  %s0 = inlined_call_operand.hbm [shape: f32[2,32,256], index: 0, kind: input, shape index: {}]
  %s1 = inlined_call_operand.vmem [shape: f32[32,2], index: 1, kind: input, shape index: {}]
  %s2 = inlined_call_operand.vmem [shape: f32[1,2], index: 2, kind: input, shape index: {}]
  %s3 = inlined_call_operand.vmem [shape: f32[32,2], index: 3, kind: input, shape index: {}]
  %s4 = inlined_call_operand.vmem [shape: f32[32,1], index: 4, kind: input, shape index: {}]
  %s5 = inlined_call_operand.hbm [shape: f32[2,32,256], index: 5, kind: output, shape index: {}]
  %s6 = sld [smem:[#allocation0]]
  $region34: #{tpu_custom_call.1} parent=0
    _
  %s8 = ssub.s32 1, %s6
  %s9 = scalar_select 0, %s8, %s6
  $region1: #{tpu_custom_call.1} parent=0
    #allocation2 [shape = 'u8[65536]{0}', space=vmem, size = 0x10000, scoped, tag = 'input window, operand 0, single buffered']
    #allocation3 [shape = 's32[1]{0}', space=sflag, size = 0x4, scoped, tag = 'scoped memory for tpu_custom_call.1']
    #allocation4 [shape = 's32[1]{0}', space=sflag, size = 0x4, scoped, tag = 'scoped memory for tpu_custom_call.1']
    #allocation5 [shape = 'u8[65536]{0}', space=vmem, size = 0x10000, scoped, tag = 'output window, operand 0, single buffered']
    %10 = vsyncpa [#allocation3], 0
    %11 = vsyncpa [#allocation4], 0
    // Predicated region
    $region2: #{tpu_custom_call.1} parent=1 // pred_check
      _
    $region3: #{tpu_custom_call.1} parent=1 // pred_check_branch
      %13 = sbr.rel (0) target = $region5
    $region4: #{tpu_custom_call.1} parent=1 // pred_region
      %s15 = ssub.s32 2048, 2048
      %16 = vsyncadd [#allocation3], %s15
      %s17 = sshll.u32 [#allocation2], 4
      %s18 = int_to_ptr.vmem [resolvable:$true] %s17
      %23 = dma.hbm_to_vmem [thread:$0]  %s0, 2048, %s18, [#allocation3], 256, 256, 16
    $region5: #{tpu_custom_call.1} parent=1 // pred_fallthru
      _
    // Predicated region
    $region6: #{tpu_custom_call.1} parent=1 // pred_check
      _
    $region7: #{tpu_custom_call.1} parent=1 // pred_check_branch
      %25 = sbr.rel (0) target = $region9
    $region8: #{tpu_custom_call.1} parent=1 // pred_region
      _
    $region9: #{tpu_custom_call.1} parent=1 // pred_fallthru
      _
    // Predicated region
    $region10: #{tpu_custom_call.1} parent=1 // pred_check
      _
    $region11: #{tpu_custom_call.1} parent=1 // pred_check_branch
      %27 = sbr.rel (0) target = $region13
    $region12: #{tpu_custom_call.1} parent=1 // pred_region
      _
    $region13: #{tpu_custom_call.1} parent=1 // pred_fallthru
      _
    // Predicated region
    $region14: #{tpu_custom_call.1} parent=1 // pred_check
      _
    $region15: #{tpu_custom_call.1} parent=1 // pred_check_branch
      %29 = sbr.rel (0) target = $region17
    $region16: #{tpu_custom_call.1} parent=1 // pred_region
      _
    $region17: #{tpu_custom_call.1} parent=1 // pred_fallthru
      _
    // Predicated region
    $region18: #{tpu_custom_call.1} parent=1 // pred_check
      _
    $region19: #{tpu_custom_call.1} parent=1 // pred_check_branch
      %31 = sbr.rel (0) target = $region21
    $region20: #{tpu_custom_call.1} parent=1 // pred_region
      _
    $region21: #{tpu_custom_call.1} parent=1 // pred_fallthru
      _
    // Predicated region
    $region22: #{tpu_custom_call.1} parent=1 // pred_check
      _
    $region23: #{tpu_custom_call.1} parent=1 // pred_check_branch
      %33 = sbr.rel (0) target = $region25
    $region24: #{tpu_custom_call.1} parent=1 // pred_region
      %34 = dma.done [#allocation3], 2048
    $region25: #{tpu_custom_call.1} parent=1 // pred_fallthru
      _
    %v35 = vld [vmem:[#allocation2] sm:$0xff]
    %v36 = vld [vmem:[#allocation2 + $0x8] sm:$0xff]
    %v37 = vld [vmem:[#allocation2 + $0x10] sm:$0xff]
    %v38 = vld [vmem:[#allocation2 + $0x18] sm:$0xff]
    %v39 = vld [vmem:[#allocation2 + $0x20] sm:$0xff]
    %v40 = vld [vmem:[#allocation2 + $0x28] sm:$0xff]
    %v41 = vld [vmem:[#allocation2 + $0x30] sm:$0xff]
    %v42 = vld [vmem:[#allocation2 + $0x38] sm:$0xff]
    %v43 = vld [vmem:[#allocation2 + $0x40] sm:$0xff]
    %v44 = vld [vmem:[#allocation2 + $0x48] sm:$0xff]
    %v45 = vld [vmem:[#allocation2 + $0x50] sm:$0xff]
    %v46 = vld [vmem:[#allocation2 + $0x58] sm:$0xff]
    %v47 = vld [vmem:[#allocation2 + $0x60] sm:$0xff]
    %v48 = vld [vmem:[#allocation2 + $0x68] sm:$0xff]
    %v49 = vld [vmem:[#allocation2 + $0x70] sm:$0xff]
    %v50 = vld [vmem:[#allocation2 + $0x78] sm:$0xff]
    %v51 = vadd.f32 %v35, %v36
    %52 = vadd.xlane.f32.xlu0 %v51
    %v53 = vpop.xlane.xlu0 %52
    %v54 = vadd.f32 %v37, %v38
    %55 = vadd.xlane.f32.xlu0 %v54
    %v56 = vpop.xlane.xlu0 %55
    %v57 = vadd.f32 %v39, %v40
    %58 = vadd.xlane.f32.xlu0 %v57
    %v59 = vpop.xlane.xlu0 %58
    %v60 = vadd.f32 %v41, %v42
    %61 = vadd.xlane.f32.xlu0 %v60
    %v62 = vpop.xlane.xlu0 %61
    %v63 = vadd.f32 %v43, %v44
    %64 = vadd.xlane.f32.xlu0 %v63
    %v65 = vpop.xlane.xlu0 %64
    %v66 = vadd.f32 %v45, %v46
    %67 = vadd.xlane.f32.xlu0 %v66
    %v68 = vpop.xlane.xlu0 %67
    %v69 = vadd.f32 %v47, %v48
    %70 = vadd.xlane.f32.xlu0 %v69
    %v71 = vpop.xlane.xlu0 %70
    %v72 = vadd.f32 %v49, %v50
    %73 = vadd.xlane.f32.xlu0 %v72
    %v74 = vpop.xlane.xlu0 %73
    %v75 = vrcp.pop 256.0
    %v76 = vmul.f32 %v53, %v75
    %v77 = vmul.f32 %v56, %v75
    %v78 = vmul.f32 %v59, %v75
    %v79 = vmul.f32 %v62, %v75
    %v80 = vmul.f32 %v65, %v75
    %v81 = vmul.f32 %v68, %v75
    %v82 = vmul.f32 %v71, %v75
    %v83 = vmul.f32 %v74, %v75
    %v84 = vld [vmem:[%s1] sm:$0xff]
    %v85 = vld [vmem:[%s1 + $0x8] sm:$0xff]
    %v86 = vld [vmem:[%s1 + $0x10] sm:$0xff]
    %v87 = vld [vmem:[%s1 + $0x18] sm:$0xff]
    %v88 = vmul.f32 %v76, %v84
    %v89 = vmul.f32 %v77, %v85
    %v90 = vmul.f32 %v78, %v86
    %v91 = vmul.f32 %v79, %v87
    %v92 = vmul.f32 %v80, %v84
    %v93 = vmul.f32 %v81, %v85
    %v94 = vmul.f32 %v82, %v86
    %v95 = vmul.f32 %v83, %v87
    %vm96 = vcmask 15360
    %v97 = vsel %vm96, %v88, 0.0
    %v98 = vsel %vm96, %v89, 0.0
    %v99 = vadd.f32 %v97, %v98
    %v100 = vsel %vm96, %v90, 0.0
    %v101 = vadd.f32 %v99, %v100
    %v102 = vsel %vm96, %v91, 0.0
    %v103 = vadd.f32 %v101, %v102
    %v104 = vrot.slane %v103, 4
    %v105 = vadd.f32 %v103, %v104
    %v106 = vrot.slane %v105, 2
    %v107 = vadd.f32 %v105, %v106
    %v108 = vrot.slane %v107, 1
    %v109 = vadd.f32 %v107, %v108
    %v110 = vsel %vm96, %v92, 0.0
    %v111 = vsel %vm96, %v93, 0.0
    %v112 = vadd.f32 %v110, %v111
    %v113 = vsel %vm96, %v94, 0.0
    %v114 = vadd.f32 %v112, %v113
    %v115 = vsel %vm96, %v95, 0.0
    %v116 = vadd.f32 %v114, %v115
    %v117 = vrot.slane %v116, 4
    %v118 = vadd.f32 %v116, %v117
    %v119 = vrot.slane %v118, 2
    %v120 = vadd.f32 %v118, %v119
    %v121 = vrot.slane %v120, 1
    %v122 = vadd.f32 %v120, %v121
    %v123 = vld [vmem:[%s2] sm:$0x1]
    %v124 = vadd.f32 %v109, %v123
    %v125 = vadd.f32 %v122, %v123
    %v126 = vmax.f32 %v124, 0.0
    %v127 = vmax.f32 %v125, 0.0
    %v128 = vld [vmem:[%s3] sm:$0xff]
    %v129 = vld [vmem:[%s3 + $0x8] sm:$0xff]
    %v130 = vld [vmem:[%s3 + $0x10] sm:$0xff]
    %v131 = vld [vmem:[%s3 + $0x18] sm:$0xff]
    %v132 = vlaneseq
    %v133 = vshrl.u32 %v132, 7
    %v134 = vsub.s32 0, %v133
    %v135 = vrot.slane %v126, %v134
    %v136 = vlaneseq
    %v137 = vshrl.u32 %v136, 7
    %v138 = vsub.s32 0, %v137
    %v139 = vrot.slane %v127, %v138
    %v140 = vmul.f32 %v135, %v128
    %v141 = vmul.f32 %v135, %v129
    %v142 = vmul.f32 %v135, %v130
    %v143 = vmul.f32 %v135, %v131
    %v144 = vmul.f32 %v139, %v128
    %v145 = vmul.f32 %v139, %v129
    %v146 = vmul.f32 %v139, %v130
    %v147 = vmul.f32 %v139, %v131
    %v148 = vsel %vm96, %v140, 0.0
    %149 = vadd.xlane.f32.xlu0 %v148
    %v150 = vpop.xlane.xlu0 %149
    %v151 = vsel %vm96, %v141, 0.0
    %152 = vadd.xlane.f32.xlu0 %v151
    %v153 = vpop.xlane.xlu0 %152
    %v154 = vsel %vm96, %v142, 0.0
    %155 = vadd.xlane.f32.xlu0 %v154
    %v156 = vpop.xlane.xlu0 %155
    %v157 = vsel %vm96, %v143, 0.0
    %158 = vadd.xlane.f32.xlu0 %v157
    %v159 = vpop.xlane.xlu0 %158
    %v160 = vsel %vm96, %v144, 0.0
    %161 = vadd.xlane.f32.xlu0 %v160
    %v162 = vpop.xlane.xlu0 %161
    %v163 = vsel %vm96, %v145, 0.0
    %164 = vadd.xlane.f32.xlu0 %v163
    %v165 = vpop.xlane.xlu0 %164
    %v166 = vsel %vm96, %v146, 0.0
    %167 = vadd.xlane.f32.xlu0 %v166
    %v168 = vpop.xlane.xlu0 %167
    %v169 = vsel %vm96, %v147, 0.0
    %170 = vadd.xlane.f32.xlu0 %v169
    %v171 = vpop.xlane.xlu0 %170
    %v172 = vld [vmem:[%s4] sm:$0xff]
    %v173 = vld [vmem:[%s4 + $0x8] sm:$0xff]
    %v174 = vld [vmem:[%s4 + $0x10] sm:$0xff]
    %v175 = vld [vmem:[%s4 + $0x18] sm:$0xff]
    %v176 = vadd.f32 %v150, %v172
    %v177 = vadd.f32 %v153, %v173
    %v178 = vadd.f32 %v156, %v174
    %v179 = vadd.f32 %v159, %v175
    %v180 = vadd.f32 %v162, %v172
    %v181 = vadd.f32 %v165, %v173
    %v182 = vadd.f32 %v168, %v174
    %v183 = vadd.f32 %v171, %v175
    %v184 = vxor.u32 %v176, 2147483648
    %v185 = vxor.u32 %v177, 2147483648
    %v186 = vxor.u32 %v178, 2147483648
    %v187 = vxor.u32 %v179, 2147483648
    %v188 = vxor.u32 %v180, 2147483648
    %v189 = vxor.u32 %v181, 2147483648
    %v190 = vxor.u32 %v182, 2147483648
    %v191 = vxor.u32 %v183, 2147483648
    %v192 = vmul.f32 %v184, 1.442695
    %v193 = vpow.pop %v192
    %v194 = vmul.f32 %v185, 1.442695
    %v195 = vpow.pop %v194
    %v196 = vmul.f32 %v186, 1.442695
    %v197 = vpow.pop %v196
    %v198 = vmul.f32 %v187, 1.442695
    %v199 = vpow.pop %v198
    %v200 = vmul.f32 %v188, 1.442695
    %v201 = vpow.pop %v200
    %v202 = vmul.f32 %v189, 1.442695
    %v203 = vpow.pop %v202
    %v204 = vmul.f32 %v190, 1.442695
    %v205 = vpow.pop %v204
    %v206 = vmul.f32 %v191, 1.442695
    %v207 = vpow.pop %v206
    %v208 = vadd.f32 %v193, 1.0
    %v209 = vadd.f32 %v195, 1.0
    %v210 = vadd.f32 %v197, 1.0
    %v211 = vadd.f32 %v199, 1.0
    %v212 = vadd.f32 %v201, 1.0
    %v213 = vadd.f32 %v203, 1.0
    %v214 = vadd.f32 %v205, 1.0
    %v215 = vadd.f32 %v207, 1.0
    %v216 = vrcp.pop %v208
    %v217 = vmul.f32 1.0, %v216
    %v218 = vrcp.pop %v209
    %v219 = vmul.f32 1.0, %v218
    %v220 = vrcp.pop %v210
    %v221 = vmul.f32 1.0, %v220
    %v222 = vrcp.pop %v211
    %v223 = vmul.f32 1.0, %v222
    %v224 = vrcp.pop %v212
    %v225 = vmul.f32 1.0, %v224
    %v226 = vrcp.pop %v213
    %v227 = vmul.f32 1.0, %v226
    %v228 = vrcp.pop %v214
    %v229 = vmul.f32 1.0, %v228
    %v230 = vrcp.pop %v215
    %v231 = vmul.f32 1.0, %v230
    %233 = vset.pattern.permute.xlu0 0
    %234 = vperm.xlu0 %233, %v217
    %v235 = vpop.permute.xlu0 %234
    %238 = vset.pattern.permute.xlu0 0
    %239 = vperm.xlu0 %238, %v219
    %v240 = vpop.permute.xlu0 %239
    %243 = vset.pattern.permute.xlu0 0
    %244 = vperm.xlu0 %243, %v221
    %v245 = vpop.permute.xlu0 %244
    %248 = vset.pattern.permute.xlu0 0
    %249 = vperm.xlu0 %248, %v223
    %v250 = vpop.permute.xlu0 %249
    %253 = vset.pattern.permute.xlu0 0
    %254 = vperm.xlu0 %253, %v225
    %v255 = vpop.permute.xlu0 %254
    %258 = vset.pattern.permute.xlu0 0
    %259 = vperm.xlu0 %258, %v227
    %v260 = vpop.permute.xlu0 %259
    %263 = vset.pattern.permute.xlu0 0
    %264 = vperm.xlu0 %263, %v229
    %v265 = vpop.permute.xlu0 %264
    %268 = vset.pattern.permute.xlu0 0
    %269 = vperm.xlu0 %268, %v231
    %v270 = vpop.permute.xlu0 %269
    %v272 = vmul.f32 %v35, %v235
    %v273 = vmul.f32 %v36, %v235
    %v274 = vmul.f32 %v37, %v240
    %v275 = vmul.f32 %v38, %v240
    %v276 = vmul.f32 %v39, %v245
    %v277 = vmul.f32 %v40, %v245
    %v278 = vmul.f32 %v41, %v250
    %v279 = vmul.f32 %v42, %v250
    %v280 = vmul.f32 %v43, %v255
    %v281 = vmul.f32 %v44, %v255
    %v282 = vmul.f32 %v45, %v260
    %v283 = vmul.f32 %v46, %v260
    %v284 = vmul.f32 %v47, %v265
    %v285 = vmul.f32 %v48, %v265
    %v286 = vmul.f32 %v49, %v270
    %v287 = vmul.f32 %v50, %v270
    %288 = vst [vmem:[#allocation5] sm:$0xff] %v272
    %289 = vst [vmem:[#allocation5 + $0x8] sm:$0xff] %v273
    %290 = vst [vmem:[#allocation5 + $0x10] sm:$0xff] %v274
    %291 = vst [vmem:[#allocation5 + $0x18] sm:$0xff] %v275
    %292 = vst [vmem:[#allocation5 + $0x20] sm:$0xff] %v276
    %293 = vst [vmem:[#allocation5 + $0x28] sm:$0xff] %v277
    %294 = vst [vmem:[#allocation5 + $0x30] sm:$0xff] %v278
    %295 = vst [vmem:[#allocation5 + $0x38] sm:$0xff] %v279
    %296 = vst [vmem:[#allocation5 + $0x40] sm:$0xff] %v280
    %297 = vst [vmem:[#allocation5 + $0x48] sm:$0xff] %v281
    %298 = vst [vmem:[#allocation5 + $0x50] sm:$0xff] %v282
    %299 = vst [vmem:[#allocation5 + $0x58] sm:$0xff] %v283
    %300 = vst [vmem:[#allocation5 + $0x60] sm:$0xff] %v284
    %301 = vst [vmem:[#allocation5 + $0x68] sm:$0xff] %v285
    %302 = vst [vmem:[#allocation5 + $0x70] sm:$0xff] %v286
    %303 = vst [vmem:[#allocation5 + $0x78] sm:$0xff] %v287
    // Predicated region
    $region26: #{tpu_custom_call.1} parent=1 // pred_check
      _
    $region27: #{tpu_custom_call.1} parent=1 // pred_check_branch
      %305 = sbr.rel (0) target = $region29
    $region28: #{tpu_custom_call.1} parent=1 // pred_region
      %s307 = ssub.s32 2048, 2048
      %308 = vsyncadd [#allocation4], %s307
      %s309 = sshll.u32 [#allocation5], 4
      %s310 = int_to_ptr.vmem [resolvable:$true] %s309
      %315 = dma.vmem_to_hbm [thread:$0]  %s310, 2048, %s5, [#allocation4], 256, 256, 16
    $region29: #{tpu_custom_call.1} parent=1 // pred_fallthru
      _
    // Predicated region
    $region30: #{tpu_custom_call.1} parent=1 // pred_check
      _
    $region31: #{tpu_custom_call.1} parent=1 // pred_check_branch
      %317 = sbr.rel (0) target = $region33
    $region32: #{tpu_custom_call.1} parent=1 // pred_region
      %318 = dma.done [#allocation4], 2048
    $region33: #{tpu_custom_call.1} parent=1 // pred_fallthru
      _
    %319 = vsyncpa [#allocation3], 1
    %320 = vsyncpa [#allocation4], 1

</llo_original>
